<compile_context>
chip_gen: v7x
topology: tpu7x:2x2x1
jax: 0.10.0
libtpu: 0.0.40
codegen_flags: <defaults>
</compile_context>

<pallas_src>
import functools

import jax
import jax.numpy as jnp
from jax.experimental import pallas as pl
from jax.experimental.pallas import tpu as pltpu

_LANE = 128


def _round_up(a, b):
    return (a + b - 1) // b * b


def _vmem_budgets():
    """Generation-aware VMEM numbers (v5e/v6e: 128 MiB, v7x: 64 MiB)."""
    cap = 64 * 1024 * 1024  # conservative default (v7x-sized)
    try:
        info = pltpu.get_tpu_info()
        cap = int(getattr(info, "vmem_capacity_bytes", cap)) or cap
    except Exception:
        pass
    vmem_limit = max(32 << 20, min(int(cap * 0.85), cap - (8 << 20)))
    fused_budget = int(cap * 0.65)
    tile_budget = (8 << 20) if cap >= (96 << 20) else (4 << 20)
    return vmem_limit, fused_budget, tile_budget


def _pick_chunk(c, hw):
    """Largest 128-multiple chunk with ~<=32 KiB of f32 live value per array."""
    cap = max(_LANE, (32768 // (4 * c)) // _LANE * _LANE)
    cap = min(cap, 1024)
    if hw >= _LANE:
        return min(cap, (hw // _LANE) * _LANE)
    return _LANE


# --------------------------------------------------------------------------
# Path 1: fused kernel (slab fits VMEM).  One batch element per grid step.
# Unpadded HW: full-dim last block dim + peeled static tail inside the kernel.
# --------------------------------------------------------------------------
def _fused_channel_attention_kernel(x_ref, w1_ref, w2_ref, o_ref, *,
                                    hw, chunk, inv_hw):
    c = x_ref.shape[0]
    nfull = hw // chunk            # static
    tail = hw - nfull * chunk      # static remainder (< chunk), may be 0
    unroll = True if nfull <= 8 else 4

    # ---- pass 1: elementwise (VPU) running sum + running max over chunks;
    #      a single cross-lane (XLU) reduce after the loop.  No masks needed:
    #      the tail is a peeled, exactly-sized slice. ----
    if nfull > 0:
        def reduce_body(i, carry):
            acc_s, acc_m = carry
            off = pl.multiple_of(i * chunk, chunk)
            xt = x_ref[:, pl.ds(off, chunk)].astype(jnp.float32)   # (C, chunk)
            return acc_s + xt, jnp.maximum(acc_m, xt)

        init = (jnp.zeros((c, chunk), jnp.float32),
                jnp.full((c, chunk), -jnp.inf, jnp.float32))
        acc_s, acc_m = jax.lax.fori_loop(0, nfull, reduce_body, init,
                                         unroll=unroll)
        s = jnp.sum(acc_s, axis=-1, keepdims=True)                 # (C, 1)
        m = jnp.max(acc_m, axis=-1, keepdims=True)                 # (C, 1)
    else:
        s = jnp.zeros((c, 1), jnp.float32)
        m = jnp.full((c, 1), -jnp.inf, jnp.float32)

    if tail > 0:  # static: only when HW is not a multiple of chunk
        xt = x_ref[:, pl.ds(nfull * chunk, tail)].astype(jnp.float32)
        s = s + jnp.sum(xt, axis=-1, keepdims=True)
        m = jnp.maximum(m, jnp.max(xt, axis=-1, keepdims=True))

    # ---- shared MLP (1x1 convs == matmuls) on both pooled vectors at once,
    #      then sigmoid(avg_out * max_out); runs once per batch element. ----
    mean = s * inv_hw                                          # mul by 1/HW
    v = jnp.concatenate([mean, m], axis=-1)                    # (C, 2)
    w1 = w1_ref[...].astype(jnp.float32)                       # (Cr, C)
    w2 = w2_ref[...].astype(jnp.float32)                       # (C, Cr)
    h = jnp.maximum(jnp.dot(w1, v, preferred_element_type=jnp.float32), 0.0)
    y = jnp.dot(w2, h, preferred_element_type=jnp.float32)     # (C, 2)
    att = jax.nn.sigmoid(y[:, 0:1] * y[:, 1:2])                # (C, 1)
    att = att.astype(o_ref.dtype)

    # ---- pass 2: apply.  Lane-aligned, lane-dense stores for the main loop;
    #      one masked store only for the small static tail. ----
    if nfull > 0:
        def apply_body(i, carry):
            off = pl.multiple_of(i * chunk, chunk)
            o_ref[:, pl.ds(off, chunk)] = att * x_ref[:, pl.ds(off, chunk)]
            return carry

        jax.lax.fori_loop(0, nfull, apply_body, 0, unroll=unroll)
    if tail > 0:
        off = nfull * chunk
        o_ref[:, pl.ds(off, tail)] = att * x_ref[:, pl.ds(off, tail)]


# --------------------------------------------------------------------------
# Path 2: two-pass tiled fallback (slab too big for VMEM).
# --------------------------------------------------------------------------
def _pool_kernel(x_ref, pooled_ref, sum_ref, max_ref, *,
                 hw, tile, inv_hw, needs_mask):
    """Fused spatial sum+max reduction, tiled over HW (grid = (N, T))."""
    t = pl.program_id(1)

    @pl.when(t == 0)
    def _init():
        sum_ref[...] = jnp.zeros_like(sum_ref)
        max_ref[...] = jnp.full_like(max_ref, -jnp.inf)

    xt = x_ref[...].astype(jnp.float32)                        # (C, tile)
    # Zero padding already makes the sum correct -> no sum mask.
    sum_ref[...] = sum_ref[...] + jnp.sum(xt, axis=-1, keepdims=True)
    if needs_mask:  # static: only when HW was padded; -inf mask for the max
        lane = jax.lax.broadcasted_iota(jnp.int32, xt.shape, 1)
        xm = jnp.where(lane < hw - t * tile, xt, -jnp.inf)
    else:
        xm = xt
    max_ref[...] = jnp.maximum(max_ref[...], jnp.max(xm, axis=-1, keepdims=True))

    @pl.when(t == pl.num_programs(1) - 1)
    def _finalize():
        mean = sum_ref[...] * inv_hw                           # (C, 1)
        pooled_ref[...] = jnp.concatenate([mean, max_ref[...]], axis=-1)


def _apply_kernel(att_ref, x_ref, o_ref):
    """out = att * x, broadcast over spatial lanes, in the input dtype."""
    o_ref[...] = att_ref[...] * x_ref[...]


# --------------------------------------------------------------------------
# Wrapper
# --------------------------------------------------------------------------
def channel_attention(x, w1, w2, *, force_two_pass=False, lane_tile=None):
    """ChannelAttention forward.  x: (N, C, H, W); w1: (C//r, C); w2: (C, C//r)."""
    N, C, H, W = x.shape
    Cr, _ = w1.shape
    HW = H * W
    itemsize = jnp.dtype(x.dtype).itemsize

    vmem_limit, fused_budget, tile_budget = _vmem_budgets()

    x2 = x.reshape(N, C, HW)

    # Fused path VMEM need: double-buffered input + output slabs (layout-padded
    # to (8,128) tiles) + resident weights + small in-kernel live values.
    c_pad = _round_up(C, 8)
    hw_pad = _round_up(HW, _LANE)
    weights_bytes = (w1.size * jnp.dtype(w1.dtype).itemsize
                     + w2.size * jnp.dtype(w2.dtype).itemsize)
    fused_bytes = 4 * c_pad * hw_pad * itemsize + 4 * weights_bytes + (1 << 20)
    use_fused = (not force_two_pass) and fused_bytes <= fused_budget

    if use_fused:
        chunk = _pick_chunk(C, HW)
        out = pl.pallas_call(
            functools.partial(_fused_channel_attention_kernel,
                              hw=HW, chunk=chunk, inv_hw=1.0 / HW),
            out_shape=jax.ShapeDtypeStruct((N, C, HW), x.dtype),
            grid=(N,),
            in_specs=[
                pl.BlockSpec((None, C, HW), lambda n: (n, 0, 0)),  # full HW: no pad
                pl.BlockSpec((Cr, C), lambda n: (0, 0)),           # resident weights
                pl.BlockSpec((C, Cr), lambda n: (0, 0)),
            ],
            out_specs=pl.BlockSpec((None, C, HW), lambda n: (n, 0, 0)),
            compiler_params=pltpu.CompilerParams(
                dimension_semantics=("parallel",),
                vmem_limit_bytes=vmem_limit),
        )(x2, w1, w2)
        return out.reshape(N, C, H, W)

    # ---------------- two-pass tiled fallback ----------------
    # Bounded lane tile (multiple of 128); generation-aware per-buffer budget.
    if lane_tile is None:
        cap = max(_LANE, (tile_budget // (C * itemsize)) // _LANE * _LANE)
    else:
        cap = max(_LANE, lane_tile // _LANE * _LANE)
    tile = min(cap, _round_up(HW, _LANE))
    HWp = _round_up(HW, tile)
    T = HWp // tile
    if HWp != HW:
        # Pad only on the (rare) oversized-slab path; fused path never pads.
        x2 = jnp.pad(x2, ((0, 0), (0, 0), (0, HWp - HW)))

    pooled = pl.pallas_call(
        functools.partial(_pool_kernel, hw=HW, tile=tile,
                          inv_hw=1.0 / HW, needs_mask=(HWp != HW)),
        out_shape=jax.ShapeDtypeStruct((N, C, 2), jnp.float32),
        grid=(N, T),
        in_specs=[pl.BlockSpec((None, C, tile), lambda n, t: (n, 0, t))],
        out_specs=pl.BlockSpec((None, C, 2), lambda n, t: (n, 0, 0)),
        scratch_shapes=[pltpu.VMEM((C, 1), jnp.float32),
                        pltpu.VMEM((C, 1), jnp.float32)],
        compiler_params=pltpu.CompilerParams(
            dimension_semantics=("parallel", "arbitrary"),
            vmem_limit_bytes=vmem_limit),
    )(x2)

    # Tiny shared MLP + sigmoid on pooled tensors, batched over all N, in
    # plain XLA (degenerate lane-2 matmuls stay off the per-step kernel path).
    avg, mx = pooled[:, :, 0], pooled[:, :, 1]                 # (N, C) each
    w1f = w1.astype(jnp.float32)
    w2f = w2.astype(jnp.float32)

    def fc(v):
        return jnp.maximum(v @ w1f.T, 0.0) @ w2f.T             # (N, C)

    att = jax.nn.sigmoid(fc(avg) * fc(mx)).astype(x.dtype)[:, :, None]  # (N, C, 1)

    out = pl.pallas_call(
        _apply_kernel,
        out_shape=jax.ShapeDtypeStruct((N, C, HWp), x.dtype),
        grid=(N, T),
        in_specs=[
            pl.BlockSpec((None, C, 1), lambda n, t: (n, 0, 0)),
            pl.BlockSpec((None, C, tile), lambda n, t: (n, 0, t)),
        ],
        out_specs=pl.BlockSpec((None, C, tile), lambda n, t: (n, 0, t)),
        compiler_params=pltpu.CompilerParams(
            dimension_semantics=("parallel", "parallel"),
            vmem_limit_bytes=vmem_limit),
    )(att, x2)

    if HWp != HW:
        out = out[:, :, :HW]
    return out.reshape(N, C, H, W)


def channel_attention_ref(x, w1, w2):
    """Pure-JAX reference mirroring the PyTorch module semantics."""
    avg = jnp.mean(x, axis=(2, 3), keepdims=True)              # (N, C, 1, 1)
    mx = jnp.max(x, axis=(2, 3), keepdims=True)                # (N, C, 1, 1)

    def fc(v):  # v: (N, C, 1, 1)
        v = v[:, :, 0, 0]                                      # (N, C)
        h = jnp.maximum(v @ w1.T, 0.0)                         # (N, Cr)
        y = h @ w2.T                                           # (N, C)
        return y[:, :, None, None]

    out = jax.nn.sigmoid(fc(avg) * fc(mx))                     # (N, C, 1, 1)
    return out * x


if __name__ == "__main__":
    key = jax.random.PRNGKey(0)
    key_a, key_b, key_c = jax.random.split(key, 3)

    def make_inputs(k, n, c, h, w, ratio):
        kx, k1, k2 = jax.random.split(k, 3)
        cr = c // ratio
        xi = jax.random.normal(kx, (n, c, h, w), dtype=jnp.float32)
        w1i = jax.random.normal(k1, (cr, c), dtype=jnp.float32) * 0.5
        w2i = jax.random.normal(k2, (c, cr), dtype=jnp.float32) * 0.5
        return xi, w1i, w2i

    def check(out, ref):
        assert out.shape == ref.shape
        assert jnp.allclose(out, ref, atol=1e-5, rtol=1e-5), "mismatch vs reference"

    # Case 1: module-consistent small shapes (N=2, C=4, H=W=16, ratio=2).
    # HW=256 (128-multiple) -> fused kernel, lane-aligned chunks, no tail.
    x, w1, w2 = make_inputs(key_a, 2, 4, 16, 16, 2)
    ref = channel_attention_ref(x, w1, w2)
    out = jax.block_until_ready(channel_attention(x, w1, w2))
    check(out, ref)

    # Case 2: same inputs through the two-pass tiled fallback (the path that
    # oversized C*HW slabs take), with a 128-lane tile so HW is actually split.
    out2 = jax.block_until_ready(
        channel_attention(x, w1, w2, force_two_pass=True, lane_tile=128))
    check(out2, ref)

    # Case 3: HW not a multiple of 128 (H=W=15, HW=225) -> fused path with the
    # in-kernel peeled tail (no jnp.pad / output slice), and the fallback's
    # masked max path.
    xb, w1b, w2b = make_inputs(key_b, 2, 8, 15, 15, 4)
    refb = channel_attention_ref(xb, w1b, w2b)
    outb = jax.block_until_ready(channel_attention(xb, w1b, w2b))
    check(outb, refb)
    outb2 = jax.block_until_ready(
        channel_attention(xb, w1b, w2b, force_two_pass=True, lane_tile=128))
    check(outb2, refb)

    # Case 4: N=1 and HW < 128 (H=7, W=9) -> fused kernel with zero full
    # chunks (everything handled by the tail slice).
    xc, w1c, w2c = make_inputs(key_c, 1, 4, 7, 9, 2)
    refc = channel_attention_ref(xc, w1c, w2c)
    outc = jax.block_until_ready(channel_attention(xc, w1c, w2c))
    check(outc, refc)

    print("KERNEL_OK")
</pallas_src>

<mosaic_0001>
module attributes {stable_mosaic.version = 11 : i64} {
  func.func @_fused_channel_attention_kernel(%arg0: i32, %arg1: memref<1x4x256xf32, #tpu.memory_space<vmem>>, %arg2: memref<2x4xf32, #tpu.memory_space<vmem>>, %arg3: memref<4x2xf32, #tpu.memory_space<vmem>>, %arg4: memref<1x4x256xf32, #tpu.memory_space<vmem>>) attributes {dimension_semantics = [#tpu.dimension_semantics<parallel>], iteration_bounds = array<i64: 2>, scalar_prefetch = 0 : i64, scratch_operands = 0 : i64, tpu.core_type = #tpu.core_type<tc>, window_params = [{transform_indices = @transform_0, window_bounds = array<i64: 1, 4, 256>}, {pipeline_mode = #tpu.pipeline_mode<synchronous>, transform_indices = @transform_1, window_bounds = array<i64: 2, 4>}, {pipeline_mode = #tpu.pipeline_mode<synchronous>, transform_indices = @transform_2, window_bounds = array<i64: 4, 2>}, {transform_indices = @transform_3, window_bounds = array<i64: 1, 4, 256>}]} {
    %cst = arith.constant 0.000000e+00 : f32
    %0 = vector.broadcast %cst : f32 to vector<4x256xf32>
    %cst_0 = arith.constant 0xFF800000 : f32
    %1 = vector.broadcast %cst_0 : f32 to vector<4x256xf32>
    %c0_i32 = arith.constant 0 : i32
    %c256_i32 = arith.constant 256 : i32
    %2 = arith.muli %c0_i32, %c256_i32 : i32
    %3 = tpu.assume_multiple %2, 256 : i32
    %c0 = arith.constant 0 : index
    %c0_1 = arith.constant 0 : index
    %4 = arith.index_cast %3 : i32 to index
    %5 = vector.load %arg1[%c0, %c0_1, %4] : memref<1x4x256xf32, #tpu.memory_space<vmem>>, vector<1x4x256xf32>
    %6 = vector.shape_cast %5 : vector<1x4x256xf32> to vector<4x256xf32>
    %7 = arith.addf %0, %6 : vector<4x256xf32>
    %8 = arith.maximumf %1, %6 : vector<4x256xf32>
    %c1_i32 = arith.constant 1 : i32
    %cst_2 = arith.constant dense<0.000000e+00> : vector<4xf32>
    %9 = vector.multi_reduction <add>, %7, %cst_2 [1] : vector<4x256xf32> to vector<4xf32>
    %10 = vector.shape_cast %9 : vector<4xf32> to vector<4x1xf32>
    %cst_3 = arith.constant dense<0xFF800000> : vector<4xf32>
    %11 = vector.multi_reduction <maximumf>, %8, %cst_3 [1] : vector<4x256xf32> to vector<4xf32>
    %12 = vector.shape_cast %11 : vector<4xf32> to vector<4x1xf32>
    %cst_4 = arith.constant 3.906250e-03 : f32
    %13 = vector.broadcast %cst_4 : f32 to vector<4x1xf32>
    %14 = arith.mulf %10, %13 : vector<4x1xf32>
    %15 = tpu.concatenate %14, %12 in 1 : vector<4x1xf32>, vector<4x1xf32> -> vector<4x2xf32>
    %c0_5 = arith.constant 0 : index
    %c0_6 = arith.constant 0 : index
    %16 = vector.load %arg2[%c0_5, %c0_6] : memref<2x4xf32, #tpu.memory_space<vmem>>, vector<2x4xf32>
    %c0_7 = arith.constant 0 : index
    %c0_8 = arith.constant 0 : index
    %17 = vector.load %arg3[%c0_7, %c0_8] : memref<4x2xf32, #tpu.memory_space<vmem>>, vector<4x2xf32>
    %cst_9 = arith.constant dense<0.000000e+00> : vector<2x2xf32>
    %18 = tpu.matmul %16, %15, %cst_9 {dimension_numbers = #tpu.dot_dimension_numbers<[1], [0], [0], [1], [0, 0, 1, 1], [], []>} : vector<2x4xf32>, vector<4x2xf32>, vector<2x2xf32> -> vector<2x2xf32>
    %cst_10 = arith.constant 0.000000e+00 : f32
    %19 = vector.broadcast %cst_10 : f32 to vector<2x2xf32>
    %20 = arith.maximumf %18, %19 : vector<2x2xf32>
    %cst_11 = arith.constant dense<0.000000e+00> : vector<4x2xf32>
    %21 = tpu.matmul %17, %20, %cst_11 {dimension_numbers = #tpu.dot_dimension_numbers<[1], [0], [0], [1], [0, 0, 1, 1], [], []>} : vector<4x2xf32>, vector<2x2xf32>, vector<4x2xf32> -> vector<4x2xf32>
    %22 = vector.extract_strided_slice %21 {offsets = [0, 0], sizes = [4, 1], strides = [1, 1]} : vector<4x2xf32> to vector<4x1xf32>
    %23 = vector.extract_strided_slice %21 {offsets = [0, 1], sizes = [4, 1], strides = [1, 1]} : vector<4x2xf32> to vector<4x1xf32>
    %24 = arith.mulf %22, %23 : vector<4x1xf32>
    %25 = arith.negf %24 : vector<4x1xf32>
    %26 = math.exp %25 : vector<4x1xf32>
    %cst_12 = arith.constant 1.000000e+00 : f32
    %27 = vector.broadcast %cst_12 : f32 to vector<4x1xf32>
    %28 = arith.addf %27, %26 : vector<4x1xf32>
    %29 = arith.divf %27, %28 : vector<4x1xf32>
    %c0_i32_13 = arith.constant 0 : i32
    %c256_i32_14 = arith.constant 256 : i32
    %30 = arith.muli %c0_i32_13, %c256_i32_14 : i32
    %31 = tpu.assume_multiple %30, 256 : i32
    %c0_15 = arith.constant 0 : index
    %c0_16 = arith.constant 0 : index
    %32 = arith.index_cast %31 : i32 to index
    %33 = vector.load %arg1[%c0_15, %c0_16, %32] : memref<1x4x256xf32, #tpu.memory_space<vmem>>, vector<1x4x256xf32>
    %34 = vector.shape_cast %33 : vector<1x4x256xf32> to vector<4x256xf32>
    %35 = vector.broadcast %29 : vector<4x1xf32> to vector<4x256xf32>
    %36 = arith.mulf %35, %34 : vector<4x256xf32>
    %c0_17 = arith.constant 0 : index
    %c0_18 = arith.constant 0 : index
    %37 = arith.index_cast %31 : i32 to index
    %38 = vector.load %arg4[%c0_17, %c0_18, %37] : memref<1x4x256xf32, #tpu.memory_space<vmem>>, vector<1x4x256xf32>
    %39 = vector.shape_cast %38 : vector<1x4x256xf32> to vector<4x256xf32>
    %40 = vector.shape_cast %36 : vector<4x256xf32> to vector<1x4x256xf32>
    tpu.vector_store %arg4[%c0_17, %c0_18, %37], %40 {strides = array<i32>} : memref<1x4x256xf32, #tpu.memory_space<vmem>>, vector<1x4x256xf32>,
    %c1_i32_19 = arith.constant 1 : i32
    return
  }
  func.func @transform_0(%arg0: i32) -> (i32, i32, i32) {
    %c0_i32 = arith.constant 0 : i32
    %c0_i32_0 = arith.constant 0 : i32
    %c0_i32_1 = arith.constant 0 : i32
    return %arg0, %c0_i32, %c0_i32_0 : i32, i32, i32
  }
  func.func @transform_1(%arg0: i32) -> (i32, i32) {
    %c0_i32 = arith.constant 0 : i32
    %c0_i32_0 = arith.constant 0 : i32
    %c0_i32_1 = arith.constant 0 : i32
    return %c0_i32, %c0_i32_0 : i32, i32
  }
  func.func @transform_2(%arg0: i32) -> (i32, i32) {
    %c0_i32 = arith.constant 0 : i32
    %c0_i32_0 = arith.constant 0 : i32
    %c0_i32_1 = arith.constant 0 : i32
    return %c0_i32, %c0_i32_0 : i32, i32
  }
  func.func @transform_3(%arg0: i32) -> (i32, i32, i32) {
    %c0_i32 = arith.constant 0 : i32
    %c0_i32_0 = arith.constant 0 : i32
    %c0_i32_1 = arith.constant 0 : i32
    return %arg0, %c0_i32, %c0_i32_0 : i32, i32, i32
  }
}

</mosaic_0001>

<llo_original>
// kernel: tpu_custom_call.1
$region0: #{tpu_custom_call.1}
  #allocation0 [shape = 'u32[]', space=smem, size = 0x4, offset = 0x4, fixed_abs, tag = 'smem constant byte address 0x4 - core index']
  #allocation1 [shape = 'u32[144,128]{1,0:T(1,128)}', space=vmem, size = 0x12000, scoped, tag = 'internal scratch']
  %s0 = inlined_call_operand.hbm [shape: f32[2,4,256], index: 0, kind: input, shape index: {}]
  %s1 = inlined_call_operand.vmem [shape: f32[2,4], index: 1, kind: input, shape index: {}]
  %s2 = inlined_call_operand.vmem [shape: f32[4,2], index: 2, kind: input, shape index: {}]
  %s3 = inlined_call_operand.hbm [shape: f32[2,4,256], index: 3, kind: output, shape index: {}]
  %s4 = sld [smem:[#allocation0]]
  $region49: #{tpu_custom_call.1} parent=0
    _
  %s6 = ssub.s32 1, %s4
  %s7 = scalar_select 0, %s6, %s4
  $region1: #{tpu_custom_call.1} parent=0
    #allocation2 [shape = 'u8[8192]{0}', space=vmem, size = 0x2000, scoped, tag = 'input window, operand 0']
    #allocation3 [shape = 's32[2]{0}', space=sflag, size = 0x8, scoped, tag = 'scoped memory for tpu_custom_call.1']
    #allocation4 [shape = 's32[2]{0}', space=sflag, size = 0x8, scoped, tag = 'scoped memory for tpu_custom_call.1']
    #allocation5 [shape = 'u8[8192]{0}', space=vmem, size = 0x2000, scoped, tag = 'output window, operand 0']
    %8 = vsyncpa [#allocation3], 0
    %s9 = scalar_lea.sflag [#allocation3], 1
    %10 = vsyncpa %s9, 0
    %11 = vsyncpa [#allocation4], 0
    %s12 = scalar_lea.sflag [#allocation4], 1
    %13 = vsyncpa %s12, 0
    loop: start=0, step=1, limit=4
    $region2: #{tpu_custom_call.1} parent=1 // loop_pre_header
      _
    $region3: #{tpu_custom_call.1} parent=1 // loop_header
      %s15 = sphi 0, %s19
      %p16 = scmp.ge.s32.totalorder %s15, 4
      %s25 = sphi 0, %s27
      %s28 = sphi 0, %s25
      %s29 = sphi 0, %s28
      %s45 = sphi 0, %s29
      %s49 = sphi 0, %s49
      %s51 = sphi 0, %s49
      %s52 = sphi 0, %s51
      %s66 = sphi 0, %s52
      %s70 = sphi 0, %s70
      %s72 = sphi 0, %s70
      %s73 = sphi 0, %s72
      %s87 = sphi 0, %s73
      %s93 = sphi 0, %s95
      %s96 = sphi 0, %s93
      %s97 = sphi 0, %s96
      %s113 = sphi 0, %s97
    $region4: #{tpu_custom_call.1} parent=1 // loop_header_branch
      %18 = sbr.rel (%p16) target = $region8
    $region5: #{tpu_custom_call.1} parent=1 // loop_body
      %s20 = ssub.s32 %s15, 1
      %s21 = ssub.s32 %s15, 2
      %s22 = sadd.s32 %s15, 1
      %s23 = ssub.s32 %s15, %s22
      %p24 = scmp.eq.s32.totalorder %s23, 0
      %s26 = sadd.s32 %s25, 1
      %s27 = scalar_select %p24, %s25, %s26
      %p30 = pneg %p24
      %p31 = scmp.eq.s32.totalorder %s15, 1
      %p32 = por %p30, %p31
      %p33 = scmp.ne.s32.totalorder %s25, %s28
      %p34 = scmp.eq.s32.totalorder %s15, 0
      %p35 = por %p33, %p34
      %p36 = scmp.ne.s32.totalorder %s25, %s28
      %p37 = scmp.eq.s32.totalorder %s20, 1
      %p38 = por %p36, %p37
      %p39 = scmp.ne.s32.totalorder %s28, %s29
      %p40 = scmp.eq.s32.totalorder %s20, 0
      %p41 = por %p39, %p40
      %p42 = scmp.ne.s32.totalorder %s28, %s29
      %p43 = scmp.eq.s32.totalorder %s21, 1
      %p44 = por %p42, %p43
      %p46 = scmp.ne.s32.totalorder %s29, %s45
      %p47 = scmp.eq.s32.totalorder %s21, 0
      %p48 = por %p46, %p47
      %s50 = sadd.s32 %s49, 1
      %p53 = scmp.eq.s32.totalorder %s15, 1
      %p54 = scmp.ne.s32.totalorder %s49, %s51
      %p55 = scmp.eq.s32.totalorder %s15, 0
      %p56 = por %p54, %p55
      %p57 = scmp.ne.s32.totalorder %s49, %s51
      %p58 = scmp.eq.s32.totalorder %s20, 1
      %p59 = por %p57, %p58
      %p60 = scmp.ne.s32.totalorder %s51, %s52
      %p61 = scmp.eq.s32.totalorder %s20, 0
      %p62 = por %p60, %p61
      %p63 = scmp.ne.s32.totalorder %s51, %s52
      %p64 = scmp.eq.s32.totalorder %s21, 1
      %p65 = por %p63, %p64
      %p67 = scmp.ne.s32.totalorder %s52, %s66
      %p68 = scmp.eq.s32.totalorder %s21, 0
      %p69 = por %p67, %p68
      %s71 = sadd.s32 %s70, 1
      %p74 = scmp.eq.s32.totalorder %s15, 1
      %p75 = scmp.ne.s32.totalorder %s70, %s72
      %p76 = scmp.eq.s32.totalorder %s15, 0
      %p77 = por %p75, %p76
      %p78 = scmp.ne.s32.totalorder %s70, %s72
      %p79 = scmp.eq.s32.totalorder %s20, 1
      %p80 = por %p78, %p79
      %p81 = scmp.ne.s32.totalorder %s72, %s73
      %p82 = scmp.eq.s32.totalorder %s20, 0
      %p83 = por %p81, %p82
      %p84 = scmp.ne.s32.totalorder %s72, %s73
      %p85 = scmp.eq.s32.totalorder %s21, 1
      %p86 = por %p84, %p85
      %p88 = scmp.ne.s32.totalorder %s73, %s87
      %p89 = scmp.eq.s32.totalorder %s21, 0
      %p90 = por %p88, %p89
      %s91 = ssub.s32 %s15, %s22
      %p92 = scmp.eq.s32.totalorder %s91, 0
      %s94 = sadd.s32 %s93, 1
      %s95 = scalar_select %p92, %s93, %s94
      %p98 = pneg %p92
      %p99 = scmp.eq.s32.totalorder %s15, 1
      %p100 = por %p98, %p99
      %p101 = scmp.ne.s32.totalorder %s93, %s96
      %p102 = scmp.eq.s32.totalorder %s15, 0
      %p103 = por %p101, %p102
      %p104 = scmp.ne.s32.totalorder %s93, %s96
      %p105 = scmp.eq.s32.totalorder %s20, 1
      %p106 = por %p104, %p105
      %p107 = scmp.ne.s32.totalorder %s96, %s97
      %p108 = scmp.eq.s32.totalorder %s20, 0
      %p109 = por %p107, %p108
      %p110 = scmp.ne.s32.totalorder %s96, %s97
      %p111 = scmp.eq.s32.totalorder %s21, 1
      %p112 = por %p110, %p111
      %p114 = scmp.ne.s32.totalorder %s97, %s113
      %p115 = scmp.eq.s32.totalorder %s21, 0
      %p116 = por %p114, %p115
      %p117 = scmp.le.s32.totalorder 1, %s15
      %p118 = scmp.lt.s32.totalorder %s15, 3
      %p119 = pnand %p117, %p118
      %p120 = pneg %p119
      // Predicated region
      $region9: #{tpu_custom_call.1} parent=5 // pred_check
        _
      $region10: #{tpu_custom_call.1} parent=5 // pred_check_branch
        %122 = sbr.rel (%p119) target = $region12
      $region11: #{tpu_custom_call.1} parent=5 // pred_region
        %s123 = ssub.s32 %s15, 1
        // Predicated region
        $region13: #{tpu_custom_call.1} parent=11 // pred_check
          %p124 = pneg %p62
        $region14: #{tpu_custom_call.1} parent=11 // pred_check_branch
          %126 = sbr.rel (%p124) target = $region16
        $region15: #{tpu_custom_call.1} parent=11 // pred_region
          _
        $region16: #{tpu_custom_call.1} parent=11 // pred_fallthru
          _
        // Predicated region
        $region17: #{tpu_custom_call.1} parent=11 // pred_check
          %p127 = pneg %p83
        $region18: #{tpu_custom_call.1} parent=11 // pred_check_branch
          %129 = sbr.rel (%p127) target = $region20
        $region19: #{tpu_custom_call.1} parent=11 // pred_region
          _
        $region20: #{tpu_custom_call.1} parent=11 // pred_fallthru
          _
      $region12: #{tpu_custom_call.1} parent=5 // pred_fallthru
        _
      %p130 = scmp.lt.s32.totalorder %s15, 2
      // Predicated region
      $region21: #{tpu_custom_call.1} parent=5 // pred_check
        %p131 = pneg %p130
      $region22: #{tpu_custom_call.1} parent=5 // pred_check_branch
        %133 = sbr.rel (%p131) target = $region24
      $region23: #{tpu_custom_call.1} parent=5 // pred_region
        // Predicated region
        $region25: #{tpu_custom_call.1} parent=23 // pred_check
          %p134 = pneg %p35
        $region26: #{tpu_custom_call.1} parent=23 // pred_check_branch
          %136 = sbr.rel (%p134) target = $region28
        $region27: #{tpu_custom_call.1} parent=23 // pred_region
          %s137 = sand.u32 %s25, 1
          %s138 = scalar_lea.sflag [#allocation3], %s137
          %s139 = sand.u32 %s25, 1
          %s140 = smul.addr %s139, 8
          %s141 = scalar_lea.vmem [#allocation2], %s140
          %s143 = ssub.s32 128, 128
          %144 = vsyncadd %s138, %s143
          %s145 = smul.addr %s15, 2
          %s146 = smul.addr %s145, 64
          %s147 = scalar_lea.hbm %s0, %s146
          %s149 = sshll.u32 %s141, 4
          %s150 = int_to_ptr.vmem [resolvable:$true] %s149
          %152 = dma.hbm_to_vmem [thread:$0]  %s147, 128, %s150, %s138
        $region28: #{tpu_custom_call.1} parent=23 // pred_fallthru
          _
      $region24: #{tpu_custom_call.1} parent=5 // pred_fallthru
        _
      %p153 = scmp.le.s32.totalorder 1, %s15
      %p154 = scmp.lt.s32.totalorder %s15, 3
      %p155 = pnand %p153, %p154
      %p156 = pneg %p155
      // Predicated region
      $region29: #{tpu_custom_call.1} parent=5 // pred_check
        _
      $region30: #{tpu_custom_call.1} parent=5 // pred_check_branch
        %158 = sbr.rel (%p155) target = $region32
      $region31: #{tpu_custom_call.1} parent=5 // pred_region
        %s159 = ssub.s32 %s15, 1
        %s160 = sand.u32 %s28, 1
        %s161 = scalar_lea.sflag [#allocation3], %s160
        %s162 = sand.u32 %s28, 1
        %s163 = smul.addr %s162, 8
        %s164 = scalar_lea.vmem [#allocation2], %s163
        // Predicated region
        $region33: #{tpu_custom_call.1} parent=31 // pred_check
          %p165 = pneg %p41
        $region34: #{tpu_custom_call.1} parent=31 // pred_check_branch
          %167 = sbr.rel (%p165) target = $region36
        $region35: #{tpu_custom_call.1} parent=31 // pred_region
          %168 = dma.done %s161, 128
        $region36: #{tpu_custom_call.1} parent=31 // pred_fallthru
          _
        %s169 = sand.u32 %s28, 1
        %s170 = scalar_lea.sflag [#allocation3], %s169
        %s171 = sand.u32 %s28, 1
        %s172 = smul.addr %s171, 8
        %s173 = scalar_lea.vmem [#allocation2], %s172
        %p174 = pneg %p41
        %p175 = pneg %p38
        %p176 = pneg %p62
        %p177 = pneg %p59
        %p178 = pneg %p83
        %p179 = pneg %p80
        %p180 = pneg %p109
        %p181 = pneg %p106
        %s182 = sand.u32 %s96, 1
        %s183 = scalar_lea.sflag [#allocation4], %s182
        %s184 = sand.u32 %s96, 1
        %s185 = smul.addr %s184, 8
        %s186 = scalar_lea.vmem [#allocation5], %s185
        %v187 = vld [vmem:[%s164] sm:$0xff]
        %v188 = vadd.f32 %v187, 0.0
        %v190 = vcombine.high %v188, %v188
        %vm192 = vcmask 1043456
        %v193 = vsel %vm192, %v188, 0.0
        %v194 = vsel %vm192, %v190, 0.0
        %v195 = vadd.f32 %v193, %v194
        %196 = vadd.xlane.f32.xlu0 %v195
        %v197 = vpop.xlane.xlu0 %196
        %v199 = vcombine.high %v187, %v187
        %v201 = vsel %vm192, %v187, -inf
        %v202 = vsel %vm192, %v199, -inf
        %v203 = vmax.f32 %v201, %v202
        %204 = vmax.xlane.f32.xlu0 %v203
        %v205 = vpop.xlane.xlu0 %204
        %v206 = vmul.f32 %v197, 0.00390625
        %vm207 = vcmask 7168
        %v208 = vsel %vm207, %v206, %v205
        %v209 = vld [vmem:[%s1] sm:$0x3]
        %v210 = vld [vmem:[%s2] sm:$0xf]
        %vm211 = vcmask 31744
        %v213 = vsel %vm211, %v209, 0
        %v216 = vsel %vm192, %v208, 0
        %218 = vmatprep.subr.mxu0 0.0
        %219 = vmatpush1.msra.mxu0 %v216
        %220 = vmatprep.subr.mxu0 0.0
        %221 = vmatpush1.msra.mxu0 0.0
        %222 = vmatprep.subr.mxu0 0.0
        %223 = vmatpush1.msra.mxu0 0.0
        %224 = vmatprep.subr.mxu0 0.0
        %225 = vmatpush1.msra.mxu0 0.0
        %226 = vmatprep.subr.mxu0 0.0
        %227 = vmatpush1.msra.mxu0 0.0
        %228 = vmatprep.subr.mxu0 0.0
        %229 = vmatpush1.msra.mxu0 0.0
        %230 = vmatprep.subr.mxu0 0.0
        %231 = vmatpush1.msra.mxu0 0.0
        %232 = vmatprep.subr.mxu0 0.0
        %233 = vmatpush1.msra.mxu0 0.0
        %234 = vmatprep.subr.mxu0 0.0
        %235 = vmatpush1.msra.mxu0 0.0
        %236 = vmatprep.subr.mxu0 0.0
        %237 = vmatpush1.msra.mxu0 0.0
        %238 = vmatprep.subr.mxu0 0.0
        %239 = vmatpush1.msra.mxu0 0.0
        %240 = vmatprep.subr.mxu0 0.0
        %241 = vmatpush1.msra.mxu0 0.0
        %242 = vmatprep.subr.mxu0 0.0
        %243 = vmatpush1.msra.mxu0 0.0
        %244 = vmatprep.subr.mxu0 0.0
        %245 = vmatpush1.msra.mxu0 0.0
        %246 = vmatprep.subr.mxu0 0.0
        %247 = vmatpush1.msra.mxu0 0.0
        %248 = vmatprep.subr.mxu0 0.0
        %249 = vmatpush1.msra.mxu0 0.0
        %250 = vmatprep.subr.mxu0 0.0
        %251 = vmatpush1.msra.mxu0 0.0
        %252 = vmatprep.subr.mxu0 0.0
        %253 = vmatpush1.msra.mxu0 0.0
        %254 = vmatprep.subr.mxu0 0.0
        %255 = vmatpush1.msra.mxu0 0.0
        %256 = vmatprep.subr.mxu0 0.0
        %257 = vmatpush1.msra.mxu0 0.0
        %258 = vmatprep.subr.mxu0 0.0
        %259 = vmatpush1.msra.mxu0 0.0
        %260 = vmatprep.subr.mxu0 0.0
        %261 = vmatpush1.msra.mxu0 0.0
        %262 = vmatprep.subr.mxu0 0.0
        %263 = vmatpush1.msra.mxu0 0.0
        %264 = vmatprep.subr.mxu0 0.0
        %265 = vmatpush1.msra.mxu0 0.0
        %266 = vmatprep.subr.mxu0 0.0
        %267 = vmatpush1.msra.mxu0 0.0
        %268 = vmatprep.subr.mxu0 0.0
        %269 = vmatpush1.msra.mxu0 0.0
        %270 = vmatprep.subr.mxu0 0.0
        %271 = vmatpush1.msra.mxu0 0.0
        %272 = vmatprep.subr.mxu0 0.0
        %273 = vmatpush1.msra.mxu0 0.0
        %274 = vmatprep.subr.mxu0 0.0
        %275 = vmatpush1.msra.mxu0 0.0
        %276 = vmatprep.subr.mxu0 0.0
        %277 = vmatpush1.msra.mxu0 0.0
        %278 = vmatprep.subr.mxu0 0.0
        %279 = vmatpush1.msra.mxu0 0.0
        %280 = vmatprep.subr.mxu0 0.0
        %281 = vmatpush1.msra.mxu0 0.0
        %282 = vmatprep.mubr.f32.mxu0 0.0
        %283 = vmatmul.mubr.f32.gmra.mrb[0].mxu0 %v213
        %v284 = vpop.f32.mrb[0].mxu0
        %v285 = vadd.f32 0.0, %v284
        %v286 = vpop.f32.mrb[0].mxu0
        %287 = vdwg.mxu0
        %v288 = vmax.f32 %v285, 0.0
        %vm289 = vcmask 15360
        %v291 = vsel %vm289, %v210, 0
        %vm293 = vcmask 1041408
        %v295 = vsel %vm293, %v288, 0
        %297 = vmatprep.subr.mxu0 0.0
        %298 = vmatpush1.msra.mxu0 %v295
        %299 = vmatprep.subr.mxu0 0.0
        %300 = vmatpush1.msra.mxu0 0.0
        %301 = vmatprep.subr.mxu0 0.0
        %302 = vmatpush1.msra.mxu0 0.0
        %303 = vmatprep.subr.mxu0 0.0
        %304 = vmatpush1.msra.mxu0 0.0
        %305 = vmatprep.subr.mxu0 0.0
        %306 = vmatpush1.msra.mxu0 0.0
        %307 = vmatprep.subr.mxu0 0.0
        %308 = vmatpush1.msra.mxu0 0.0
        %309 = vmatprep.subr.mxu0 0.0
        %310 = vmatpush1.msra.mxu0 0.0
        %311 = vmatprep.subr.mxu0 0.0
        %312 = vmatpush1.msra.mxu0 0.0
        %313 = vmatprep.subr.mxu0 0.0
        %314 = vmatpush1.msra.mxu0 0.0
        %315 = vmatprep.subr.mxu0 0.0
        %316 = vmatpush1.msra.mxu0 0.0
        %317 = vmatprep.subr.mxu0 0.0
        %318 = vmatpush1.msra.mxu0 0.0
        %319 = vmatprep.subr.mxu0 0.0
        %320 = vmatpush1.msra.mxu0 0.0
        %321 = vmatprep.subr.mxu0 0.0
        %322 = vmatpush1.msra.mxu0 0.0
        %323 = vmatprep.subr.mxu0 0.0
        %324 = vmatpush1.msra.mxu0 0.0
        %325 = vmatprep.subr.mxu0 0.0
        %326 = vmatpush1.msra.mxu0 0.0
        %327 = vmatprep.subr.mxu0 0.0
        %328 = vmatpush1.msra.mxu0 0.0
        %329 = vmatprep.subr.mxu0 0.0
        %330 = vmatpush1.msra.mxu0 0.0
        %331 = vmatprep.subr.mxu0 0.0
        %332 = vmatpush1.msra.mxu0 0.0
        %333 = vmatprep.subr.mxu0 0.0
        %334 = vmatpush1.msra.mxu0 0.0
        %335 = vmatprep.subr.mxu0 0.0
        %336 = vmatpush1.msra.mxu0 0.0
        %337 = vmatprep.subr.mxu0 0.0
        %338 = vmatpush1.msra.mxu0 0.0
        %339 = vmatprep.subr.mxu0 0.0
        %340 = vmatpush1.msra.mxu0 0.0
        %341 = vmatprep.subr.mxu0 0.0
        %342 = vmatpush1.msra.mxu0 0.0
        %343 = vmatprep.subr.mxu0 0.0
        %344 = vmatpush1.msra.mxu0 0.0
        %345 = vmatprep.subr.mxu0 0.0
        %346 = vmatpush1.msra.mxu0 0.0
        %347 = vmatprep.subr.mxu0 0.0
        %348 = vmatpush1.msra.mxu0 0.0
        %349 = vmatprep.subr.mxu0 0.0
        %350 = vmatpush1.msra.mxu0 0.0
        %351 = vmatprep.subr.mxu0 0.0
        %352 = vmatpush1.msra.mxu0 0.0
        %353 = vmatprep.subr.mxu0 0.0
        %354 = vmatpush1.msra.mxu0 0.0
        %355 = vmatprep.subr.mxu0 0.0
        %356 = vmatpush1.msra.mxu0 0.0
        %357 = vmatprep.subr.mxu0 0.0
        %358 = vmatpush1.msra.mxu0 0.0
        %359 = vmatprep.subr.mxu0 0.0
        %360 = vmatpush1.msra.mxu0 0.0
        %361 = vmatprep.mubr.f32.mxu0 0.0
        %362 = vmatmul.mubr.f32.gmra.mrb[0].mxu0 %v291
        %v363 = vpop.f32.mrb[0].mxu0
        %v364 = vadd.f32 0.0, %v363
        %v365 = vpop.f32.mrb[0].mxu0
        %366 = vdwg.mxu0
        %368 = vrot.lane.b32.xlu0 %v364, 127
        %v369 = vpop.permute.xlu0 %368
        %v371 = vmul.f32 %v364, %v369
        %v372 = vxor.u32 %v371, 2147483648
        %v373 = vmul.f32 %v372, 1.442695
        %v374 = vpow.pop %v373
        %v375 = vadd.f32 %v374, 1.0
        %v376 = vrcp.pop %v375
        %v377 = vmul.f32 1.0, %v376
        %379 = vset.pattern.permute.xlu0 0
        %380 = vperm.xlu0 %379, %v377
        %v381 = vpop.permute.xlu0 %380
        %v383 = vmul.f32 %v381, %v187
        %v384 = vmul.f32 %v381, %v199
        %v387 = vcombine.low %v383, %v384
        %389 = vst [vmem:[%s186] sm:$0xff] %v387
        %s390 = sand.u32 %s96, 1
        %s391 = scalar_lea.sflag [#allocation4], %s390
        %s392 = sand.u32 %s96, 1
        %s393 = smul.addr %s392, 8
        %s394 = scalar_lea.vmem [#allocation5], %s393
        // Predicated region
        $region37: #{tpu_custom_call.1} parent=31 // pred_check
          %p395 = pneg %p106
        $region38: #{tpu_custom_call.1} parent=31 // pred_check_branch
          %397 = sbr.rel (%p395) target = $region40
        $region39: #{tpu_custom_call.1} parent=31 // pred_region
          %s399 = ssub.s32 128, 128
          %400 = vsyncadd %s391, %s399
          %s401 = smul.addr %s20, 2
          %s402 = smul.addr %s401, 64
          %s403 = scalar_lea.hbm %s3, %s402
          %s405 = sshll.u32 %s394, 4
          %s406 = int_to_ptr.vmem [resolvable:$true] %s405
          %408 = dma.vmem_to_hbm [thread:$0]  %s406, 128, %s403, %s391
        $region40: #{tpu_custom_call.1} parent=31 // pred_fallthru
          _
      $region32: #{tpu_custom_call.1} parent=5 // pred_fallthru
        _
      %p409 = scmp.le.s32.totalorder 2, %s15
      // Predicated region
      $region41: #{tpu_custom_call.1} parent=5 // pred_check
        %p410 = pneg %p409
      $region42: #{tpu_custom_call.1} parent=5 // pred_check_branch
        %412 = sbr.rel (%p410) target = $region44
      $region43: #{tpu_custom_call.1} parent=5 // pred_region
        %s413 = ssub.s32 %s15, 2
        // Predicated region
        $region45: #{tpu_custom_call.1} parent=43 // pred_check
          %p414 = pneg %p112
        $region46: #{tpu_custom_call.1} parent=43 // pred_check_branch
          %416 = sbr.rel (%p414) target = $region48
        $region47: #{tpu_custom_call.1} parent=43 // pred_region
          %s417 = sand.u32 %s97, 1
          %s418 = scalar_lea.sflag [#allocation4], %s417
          %s419 = sand.u32 %s97, 1
          %s420 = smul.addr %s419, 8
          %s421 = scalar_lea.vmem [#allocation5], %s420
          %422 = dma.done %s418, 128
        $region48: #{tpu_custom_call.1} parent=43 // pred_fallthru
          _
      $region44: #{tpu_custom_call.1} parent=5 // pred_fallthru
        _
    $region6: #{tpu_custom_call.1} parent=1 // loop_footer
      %s19 = sadd.s32 1, %s15
    $region7: #{tpu_custom_call.1} parent=1 // loop_footer_branch
      %14 = sbr.rel target = $region3
    $region8: #{tpu_custom_call.1} parent=1 // loop_exit
      _
    %423 = vsyncpa [#allocation3], 1
    %s424 = scalar_lea.sflag [#allocation3], 1
    %425 = vsyncpa %s424, 1
    %426 = vsyncpa [#allocation4], 1
    %s427 = scalar_lea.sflag [#allocation4], 1
    %428 = vsyncpa %s427, 1

</llo_original>
